<compile_context>
chip_gen: v6e
topology: v6e:2x2x1
jax: 0.10.0
libtpu: 0.0.40
codegen_flags: <defaults>
</compile_context>

<pallas_src>
import functools
import math

import jax
import jax.numpy as jnp
from jax.experimental import pallas as pl
from jax.experimental.pallas import tpu as pltpu


def _round_up(a: int, b: int) -> int:
    return ((a + b - 1) // b) * b


def _matern_tail(dist_f32, d2_f32, *, nu, compute_dtype):
    """exp + nu polynomial.  dist/d2 arrive in f32 (clamps already applied);
    the EUP/VPU tail runs in `compute_dtype` (bf16 when the caller wants bf16
    output -- bf16-native EUP/VPU on v6e/v7x roughly doubles exp throughput)."""
    dist = dist_f32.astype(compute_dtype)
    exp_component = jnp.exp((-math.sqrt(2.0 * nu)) * dist)
    if nu == 0.5:
        return exp_component
    if nu == 1.5:
        return (math.sqrt(3.0) * dist + 1.0) * exp_component
    # nu == 2.5: reuse the already-computed d2 instead of dist*dist
    # (saves one full-tile VPU multiply).
    d2 = d2_f32.astype(compute_dtype)
    return (math.sqrt(5.0) * dist + 1.0 + (5.0 / 3.0) * d2) * exp_component


def _matern_smalld_kernel(x_ref, yt_ref, o_ref, *, nu, d, compute_dtype):
    # x_ref : (TN, D)  f32  centered/scaled x rows
    # yt_ref: (D, TM)  f32  centered/scaled y columns (pre-transposed)
    # o_ref : (TN, TM) caller dtype
    #
    # Explicit-difference pairwise distances: ~5 VPU ops per output element,
    # fully hidden under the binding EUP sqrt+exp chain.  No MXU, no xn/yn
    # side streams, no cancellation issues.
    x = x_ref[...]
    yt = yt_ref[...]
    d2 = None
    for k in range(d):                 # d is tiny & static: unrolled at trace
        diff = x[:, k:k + 1] - yt[k:k + 1, :]      # (TN,1)-(1,TM) -> (TN,TM)
        sq = diff * diff
        d2 = sq if d2 is None else d2 + sq
    dist = jnp.maximum(jnp.sqrt(d2), 1e-15)        # cdist().clamp_min(1e-15)
    o_ref[...] = _matern_tail(dist, d2, nu=nu,
                              compute_dtype=compute_dtype).astype(o_ref.dtype)


def _matern_gram_kernel(x_ref, yt_ref, xn_ref, yn_ref, o_ref, *, nu,
                        compute_dtype):
    # Large-D path: bf16 MXU Gram (f32 accumulation) + hoisted f32 norms.
    # x_ref : (TN, D) bf16 ; yt_ref : (D, TM) bf16
    # xn_ref: (TN, 1) f32  ; yn_ref : (1, TM) f32
    gram = jnp.dot(x_ref[...], yt_ref[...], preferred_element_type=jnp.float32)
    d2 = jnp.maximum(xn_ref[...] + yn_ref[...] - 2.0 * gram, 0.0)
    dist = jnp.maximum(jnp.sqrt(d2), 1e-15)
    o_ref[...] = _matern_tail(dist, d2, nu=nu,
                              compute_dtype=compute_dtype).astype(o_ref.dtype)


class MaternKernelPallas:
    """Pallas/TPU re-implementation of SpaVAE's MaternKernel.forward."""

    def __init__(self, scale=1.0, nu=1.5, dtype=jnp.float32,
                 tile_n=512, tile_m=2048, mxu_min_d=64):
        if nu not in {0.5, 1.5, 2.5}:
            raise RuntimeError("nu expected to be 0.5, 1.5, or 2.5")
        self.nu = nu
        # Mirrors torch.tensor([scale]); the trainable (fixed_scale=False)
        # variant just supplies this value from a pytree -- forward math is
        # identical.
        self.scale = jnp.asarray([scale], dtype=dtype)
        self.tile_n = tile_n
        self.tile_m = tile_m
        self.mxu_min_d = mxu_min_d

    def __call__(self, x, y):
        out_dtype = x.dtype
        xf = x.astype(jnp.float32)
        yf = y.astype(jnp.float32)
        scale = self.scale.astype(jnp.float32)

        # Cheap O((N+M)*D) centering/scaling glue stays in plain JAX
        # (negligible next to the N*M kernel output).
        mean = jnp.mean(xf, axis=-2, keepdims=True)
        x_ = (xf - mean) / scale
        y_ = (yf - mean) / scale

        n, d = x_.shape
        m = y_.shape[0]
        yt = y_.T                                   # (d, m): MXU/broadcast friendly

        # Tile sizes: either a (mult-of-8, mult-of-128) tile or the full dim
        # (both always legal).  No padding of the arrays themselves.
        tn = min(self.tile_n, n)
        tm = min(self.tile_m, m)
        # v7x megacore: if the grid would collapse to a single step, split the
        # larger dimension so both TensorCores get work (no-op on v5e/v6e).
        if pl.cdiv(n, tn) * pl.cdiv(m, tm) < 2:
            if m >= 2 * 128:
                tm = _round_up(pl.cdiv(m, 2), 128)
            else:
                sub = 8 if out_dtype.itemsize >= 4 else 16
                if n >= 2 * sub:
                    tn = _round_up(pl.cdiv(n, 2), sub)

        grid = (pl.cdiv(n, tn), pl.cdiv(m, tm))
        compute_dtype = (jnp.bfloat16 if out_dtype == jnp.bfloat16
                         else jnp.float32)

        if d < self.mxu_min_d:
            # SpaVAE regime (D~2): pure VPU explicit-difference distances.
            kernel = functools.partial(_matern_smalld_kernel, nu=self.nu, d=d,
                                       compute_dtype=compute_dtype)
            in_specs = [
                pl.BlockSpec((tn, d), lambda i, j: (i, 0)),   # x rows
                pl.BlockSpec((d, tm), lambda i, j: (0, j)),   # y^T cols
            ]
            operands = (x_, yt)
        else:
            # Large-D: bf16 MXU Gram, f32 norms hoisted to the wrapper.
            # TODO(synk): pad D to the MXU contraction size (128/256) for the
            # cleanest vmatmul cadence; not required for correctness.
            xn = jnp.sum(x_ * x_, axis=-1, keepdims=True)     # (n, 1) f32
            yn = jnp.sum(yt * yt, axis=0, keepdims=True)      # (1, m) f32
            kernel = functools.partial(_matern_gram_kernel, nu=self.nu,
                                       compute_dtype=compute_dtype)
            in_specs = [
                pl.BlockSpec((tn, d), lambda i, j: (i, 0)),
                pl.BlockSpec((d, tm), lambda i, j: (0, j)),
                pl.BlockSpec((tn, 1), lambda i, j: (i, 0)),
                pl.BlockSpec((1, tm), lambda i, j: (0, j)),
            ]
            operands = (x_.astype(jnp.bfloat16), yt.astype(jnp.bfloat16),
                        xn, yn)

        # Output goes straight to the unpadded (n, m) array in the caller's
        # dtype: Pallas masks edge-tile writeback DMAs, so there is no extra
        # pad/slice/cast pass over the N*M result.
        return pl.pallas_call(
            kernel,
            out_shape=jax.ShapeDtypeStruct((n, m), out_dtype),
            grid_spec=pltpu.PrefetchScalarGridSpec(
                num_scalar_prefetch=0,
                grid=grid,
                in_specs=in_specs,
                out_specs=pl.BlockSpec((tn, tm), lambda i, j: (i, j)),
            ),
            compiler_params=pltpu.CompilerParams(
                dimension_semantics=("parallel", "parallel"),
            ),
        )(*operands)


def _reference_matern(x, y, scale, nu):
    x = x.astype(jnp.float32)
    y = y.astype(jnp.float32)
    mean = jnp.mean(x, axis=-2, keepdims=True)
    x_ = (x - mean) / scale
    y_ = (y - mean) / scale
    d2 = jnp.sum((x_[:, None, :] - y_[None, :, :]) ** 2, axis=-1)
    dist = jnp.maximum(jnp.sqrt(jnp.maximum(d2, 0.0)), 1e-15)
    ec = jnp.exp(-math.sqrt(nu * 2.0) * dist)
    if nu == 0.5:
        cc = 1.0
    elif nu == 1.5:
        cc = math.sqrt(3.0) * dist + 1.0
    else:
        cc = math.sqrt(5.0) * dist + 1.0 + (5.0 / 3.0) * dist ** 2
    return cc * ec


if __name__ == "__main__":
    key = jax.random.PRNGKey(0)
    kx, ky, kx2, ky2 = jax.random.split(key, 4)

    # SpaVAE regime: 2-D spot coordinates; N/M deliberately not multiples of
    # 8/128 so the edge-masked writeback path is exercised.
    N, M, D = 20, 24, 2
    x = jax.random.normal(kx, (N, D), dtype=jnp.float32)
    y = jax.random.normal(ky, (M, D), dtype=jnp.float32)

    for nu in (0.5, 1.5, 2.5):
        matern = MaternKernelPallas(scale=1.0, nu=nu)
        out = jax.block_until_ready(matern(x, y))
        ref = _reference_matern(x, y, 1.0, nu)
        assert out.shape == (N, M) and out.dtype == x.dtype
        assert jnp.allclose(out, ref, atol=1e-4, rtol=1e-4), (
            f"mismatch vs reference for nu={nu}: "
            f"max abs err {jnp.max(jnp.abs(out - ref))}")

    # bf16 caller: kernel writes bf16 directly (half the HBM writeback) and
    # runs the exp/polynomial tail in bf16; looser tolerance is inherent to
    # the output precision.
    xb = x.astype(jnp.bfloat16)
    yb = y.astype(jnp.bfloat16)
    out_b = jax.block_until_ready(MaternKernelPallas(scale=1.0, nu=1.5)(xb, yb))
    ref_b = _reference_matern(xb, yb, 1.0, 1.5)
    assert out_b.dtype == jnp.bfloat16 and out_b.shape == (N, M)
    assert jnp.allclose(out_b.astype(jnp.float32), ref_b, atol=3e-2, rtol=3e-2)

    # Large-D switch: exercises the bf16-operand MXU Gram path (tolerance
    # reflects bf16 operands; accumulation and norms stay f32).
    N2, M2, D2 = 64, 300, 128
    x2 = jax.random.normal(kx2, (N2, D2), dtype=jnp.float32) * 0.1
    y2 = jax.random.normal(ky2, (M2, D2), dtype=jnp.float32) * 0.1
    out2 = jax.block_until_ready(MaternKernelPallas(scale=1.0, nu=2.5)(x2, y2))
    ref2 = _reference_matern(x2, y2, 1.0, 2.5)
    assert out2.shape == (N2, M2)
    assert jnp.allclose(out2, ref2, atol=1e-2, rtol=1e-2), (
        f"MXU-path mismatch: max abs err {jnp.max(jnp.abs(out2 - ref2))}")

    print("KERNEL_OK")
</pallas_src>

<mosaic_0001>
module attributes {stable_mosaic.version = 11 : i64} {
  func.func @_matern_smalld_kernel(%arg0: i32, %arg1: i32, %arg2: memref<16x2xf32, #tpu.memory_space<vmem>>, %arg3: memref<2x24xf32, #tpu.memory_space<vmem>>, %arg4: memref<16x24xf32, #tpu.memory_space<vmem>>) attributes {dimension_semantics = [#tpu.dimension_semantics<parallel>, #tpu.dimension_semantics<parallel>], iteration_bounds = array<i64: 2, 1>, scalar_prefetch = 0 : i64, scratch_operands = 0 : i64, tpu.core_type = #tpu.core_type<tc>, window_params = [{transform_indices = @transform_0, window_bounds = array<i64: 16, 2>}, {transform_indices = @transform_1, window_bounds = array<i64: 2, 24>}, {transform_indices = @transform_2, window_bounds = array<i64: 16, 24>}]} {
    %c0 = arith.constant 0 : index
    %c0_0 = arith.constant 0 : index
    %0 = vector.load %arg2[%c0, %c0_0] : memref<16x2xf32, #tpu.memory_space<vmem>>, vector<16x2xf32>
    %c0_1 = arith.constant 0 : index
    %c0_2 = arith.constant 0 : index
    %1 = vector.load %arg3[%c0_1, %c0_2] : memref<2x24xf32, #tpu.memory_space<vmem>>, vector<2x24xf32>
    %2 = vector.extract_strided_slice %0 {offsets = [0, 0], sizes = [16, 1], strides = [1, 1]} : vector<16x2xf32> to vector<16x1xf32>
    %3 = vector.extract_strided_slice %1 {offsets = [0, 0], sizes = [1, 24], strides = [1, 1]} : vector<2x24xf32> to vector<1x24xf32>
    %4 = vector.broadcast %2 : vector<16x1xf32> to vector<16x24xf32>
    %5 = vector.broadcast %3 : vector<1x24xf32> to vector<16x24xf32>
    %6 = arith.subf %4, %5 : vector<16x24xf32>
    %7 = arith.mulf %6, %6 : vector<16x24xf32>
    %8 = vector.extract_strided_slice %0 {offsets = [0, 1], sizes = [16, 1], strides = [1, 1]} : vector<16x2xf32> to vector<16x1xf32>
    %9 = vector.extract_strided_slice %1 {offsets = [1, 0], sizes = [1, 24], strides = [1, 1]} : vector<2x24xf32> to vector<1x24xf32>
    %10 = vector.broadcast %8 : vector<16x1xf32> to vector<16x24xf32>
    %11 = vector.broadcast %9 : vector<1x24xf32> to vector<16x24xf32>
    %12 = arith.subf %10, %11 : vector<16x24xf32>
    %13 = arith.mulf %12, %12 : vector<16x24xf32>
    %14 = arith.addf %7, %13 : vector<16x24xf32>
    %15 = math.sqrt %14 : vector<16x24xf32>
    %cst = arith.constant 1.000000e-15 : f32
    %16 = vector.broadcast %cst : f32 to vector<16x24xf32>
    %17 = arith.maximumf %15, %16 : vector<16x24xf32>
    %cst_3 = arith.constant -1.000000e+00 : f32
    %18 = vector.broadcast %cst_3 : f32 to vector<16x24xf32>
    %19 = arith.mulf %18, %17 : vector<16x24xf32>
    %20 = math.exp %19 : vector<16x24xf32>
    %c0_4 = arith.constant 0 : index
    %c0_5 = arith.constant 0 : index
    %21 = vector.load %arg4[%c0_4, %c0_5] : memref<16x24xf32, #tpu.memory_space<vmem>>, vector<16x24xf32>
    tpu.vector_store %arg4[%c0_4, %c0_5], %20 {strides = array<i32>} : memref<16x24xf32, #tpu.memory_space<vmem>>, vector<16x24xf32>,
    return
  }
  func.func @transform_0(%arg0: i32, %arg1: i32) -> (i32, i32) {
    %c0_i32 = arith.constant 0 : i32
    %c0_i32_0 = arith.constant 0 : i32
    return %arg0, %c0_i32 : i32, i32
  }
  func.func @transform_1(%arg0: i32, %arg1: i32) -> (i32, i32) {
    %c0_i32 = arith.constant 0 : i32
    %c0_i32_0 = arith.constant 0 : i32
    return %c0_i32, %arg1 : i32, i32
  }
  func.func @transform_2(%arg0: i32, %arg1: i32) -> (i32, i32) {
    %c0_i32 = arith.constant 0 : i32
    return %arg0, %arg1 : i32, i32
  }
}

</mosaic_0001>

<llo_original>
// kernel: tpu_custom_call.1
$region0: #{tpu_custom_call.1}
  #allocation0 [shape = 'u32[]', space=smem, size = 0x4, offset = 0x4, fixed_abs, tag = 'smem constant byte address 0x4 - core index']
  #allocation1 [shape = 'u32[144,128]{1,0:T(1,128)}', space=vmem, size = 0x12000, scoped, tag = 'internal scratch']
  %s0 = inlined_call_operand.vmem [shape: f32[20,2], index: 0, kind: input, shape index: {}]
  %s1 = inlined_call_operand.vmem [shape: f32[2,24], index: 1, kind: input, shape index: {}]
  %s2 = inlined_call_operand.hbm [shape: f32[20,24], index: 2, kind: output, shape index: {}]
  %s3 = sld [smem:[#allocation0]]
  $region41: #{tpu_custom_call.1} parent=0
    _
  %s5 = ssub.s32 1, %s3
  %s6 = scalar_select 0, %s5, %s3
  $region1: #{tpu_custom_call.1} parent=0
    #allocation2 [shape = 'u8[16384]{0}', space=vmem, size = 0x4000, scoped, tag = 'output window, operand 0']
    #allocation3 [shape = 's32[2]{0}', space=sflag, size = 0x8, scoped, tag = 'scoped memory for tpu_custom_call.1']
    %7 = vsyncpa [#allocation3], 0
    %s8 = scalar_lea.sflag [#allocation3], 1
    %9 = vsyncpa %s8, 0
    loop: start=0, step=1, limit=4
    $region2: #{tpu_custom_call.1} parent=1 // loop_pre_header
      _
    $region3: #{tpu_custom_call.1} parent=1 // loop_header
      %s11 = sphi 0, %s15
      %p12 = scmp.ge.s32.totalorder %s11, 4
      %s18 = sphi 0, %s30
      %s19 = sphi 0, %s26
      %s20 = sphi 0, %s18
      %s21 = sphi 0, %s19
      %s22 = sphi 0, %s20
      %s23 = sphi 0, %s21
      %s33 = sphi 0, %s35
      %s36 = sphi 0, %s33
      %s37 = sphi 0, %s36
      %s53 = sphi 0, %s37
      %s59 = sphi 0, %s61
      %s62 = sphi 0, %s59
      %s63 = sphi 0, %s62
      %s79 = sphi 0, %s63
      %s87 = sphi 0, %s89
      %s90 = sphi 0, %s87
      %s91 = sphi 0, %s90
      %s107 = sphi 0, %s91
    $region4: #{tpu_custom_call.1} parent=1 // loop_header_branch
      %14 = sbr.rel (%p12) target = $region8
    $region5: #{tpu_custom_call.1} parent=1 // loop_body
      %s16 = ssub.s32 %s11, 1
      %s17 = ssub.s32 %s11, 2
      %s24 = sadd.s32 1, %s19
      %p25 = scmp.ge.s32.totalorder %s24, 1
      %s26 = scalar_select %p25, 0, %s24
      %s27 = sadd.s32 1, %s18
      %s28 = scalar_select %p25, %s27, %s18
      %p29 = scmp.ge.s32.totalorder %s28, 2
      %s30 = scalar_select %p29, 0, %s28
      %s31 = ssub.s32 %s18, %s30
      %p32 = scmp.eq.s32.totalorder %s31, 0
      %s34 = sadd.s32 %s33, 1
      %s35 = scalar_select %p32, %s33, %s34
      %p38 = pneg %p32
      %p39 = scmp.eq.s32.totalorder %s11, 1
      %p40 = por %p38, %p39
      %p41 = scmp.ne.s32.totalorder %s33, %s36
      %p42 = scmp.eq.s32.totalorder %s11, 0
      %p43 = por %p41, %p42
      %p44 = scmp.ne.s32.totalorder %s33, %s36
      %p45 = scmp.eq.s32.totalorder %s16, 1
      %p46 = por %p44, %p45
      %p47 = scmp.ne.s32.totalorder %s36, %s37
      %p48 = scmp.eq.s32.totalorder %s16, 0
      %p49 = por %p47, %p48
      %p50 = scmp.ne.s32.totalorder %s36, %s37
      %p51 = scmp.eq.s32.totalorder %s17, 1
      %p52 = por %p50, %p51
      %p54 = scmp.ne.s32.totalorder %s37, %s53
      %p55 = scmp.eq.s32.totalorder %s17, 0
      %p56 = por %p54, %p55
      %s57 = ssub.s32 %s19, %s26
      %p58 = scmp.eq.s32.totalorder %s57, 0
      %s60 = sadd.s32 %s59, 1
      %s61 = scalar_select %p58, %s59, %s60
      %p64 = pneg %p58
      %p65 = scmp.eq.s32.totalorder %s11, 1
      %p66 = por %p64, %p65
      %p67 = scmp.ne.s32.totalorder %s59, %s62
      %p68 = scmp.eq.s32.totalorder %s11, 0
      %p69 = por %p67, %p68
      %p70 = scmp.ne.s32.totalorder %s59, %s62
      %p71 = scmp.eq.s32.totalorder %s16, 1
      %p72 = por %p70, %p71
      %p73 = scmp.ne.s32.totalorder %s62, %s63
      %p74 = scmp.eq.s32.totalorder %s16, 0
      %p75 = por %p73, %p74
      %p76 = scmp.ne.s32.totalorder %s62, %s63
      %p77 = scmp.eq.s32.totalorder %s17, 1
      %p78 = por %p76, %p77
      %p80 = scmp.ne.s32.totalorder %s63, %s79
      %p81 = scmp.eq.s32.totalorder %s17, 0
      %p82 = por %p80, %p81
      %s83 = ssub.s32 %s18, %s30
      %s84 = ssub.s32 %s19, %s26
      %s85 = sor.u32 %s83, %s84
      %p86 = scmp.eq.s32.totalorder %s85, 0
      %s88 = sadd.s32 %s87, 1
      %s89 = scalar_select %p86, %s87, %s88
      %p92 = pneg %p86
      %p93 = scmp.eq.s32.totalorder %s11, 1
      %p94 = por %p92, %p93
      %p95 = scmp.ne.s32.totalorder %s87, %s90
      %p96 = scmp.eq.s32.totalorder %s11, 0
      %p97 = por %p95, %p96
      %p98 = scmp.ne.s32.totalorder %s87, %s90
      %p99 = scmp.eq.s32.totalorder %s16, 1
      %p100 = por %p98, %p99
      %p101 = scmp.ne.s32.totalorder %s90, %s91
      %p102 = scmp.eq.s32.totalorder %s16, 0
      %p103 = por %p101, %p102
      %p104 = scmp.ne.s32.totalorder %s90, %s91
      %p105 = scmp.eq.s32.totalorder %s17, 1
      %p106 = por %p104, %p105
      %p108 = scmp.ne.s32.totalorder %s91, %s107
      %p109 = scmp.eq.s32.totalorder %s17, 0
      %p110 = por %p108, %p109
      %p111 = scmp.le.s32.totalorder 1, %s11
      %p112 = scmp.lt.s32.totalorder %s11, 3
      %p113 = pnand %p111, %p112
      %p114 = pneg %p113
      // Predicated region
      $region9: #{tpu_custom_call.1} parent=5 // pred_check
        _
      $region10: #{tpu_custom_call.1} parent=5 // pred_check_branch
        %116 = sbr.rel (%p113) target = $region12
      $region11: #{tpu_custom_call.1} parent=5 // pred_region
        %s117 = ssub.s32 %s11, 1
        // Predicated region
        $region13: #{tpu_custom_call.1} parent=11 // pred_check
          %p118 = pneg %p75
        $region14: #{tpu_custom_call.1} parent=11 // pred_check_branch
          %120 = sbr.rel (%p118) target = $region16
        $region15: #{tpu_custom_call.1} parent=11 // pred_region
          %p121 = scmp.lt.s32.totalorder %s21, 0
          %s122 = scalar_select %p121, %s21, 0
          %s123 = smul.addr %s122, 2
          %s124 = scalar_lea.vmem %s1, %s123
        $region16: #{tpu_custom_call.1} parent=11 // pred_fallthru
          _
      $region12: #{tpu_custom_call.1} parent=5 // pred_fallthru
        _
      %p125 = scmp.lt.s32.totalorder %s11, 2
      // Predicated region
      $region17: #{tpu_custom_call.1} parent=5 // pred_check
        %p126 = pneg %p125
      $region18: #{tpu_custom_call.1} parent=5 // pred_check_branch
        %128 = sbr.rel (%p126) target = $region20
      $region19: #{tpu_custom_call.1} parent=5 // pred_region
        // Predicated region
        $region21: #{tpu_custom_call.1} parent=19 // pred_check
          %p129 = pneg %p43
        $region22: #{tpu_custom_call.1} parent=19 // pred_check_branch
          %131 = sbr.rel (%p129) target = $region24
        $region23: #{tpu_custom_call.1} parent=19 // pred_region
          %s132 = smul.u32 2, %s18
          %s133 = ssub.s32 3, %s132
          %p134 = scmp.lt.s32.totalorder %s133, 2
          %s135 = scalar_select %p134, %s133, 2
          %s136 = smul.u32 128, %s135
          %p137 = scmp.lt.s32.totalorder %s132, 2
          %s138 = scalar_select %p137, %s132, 2
          %s139 = smul.addr %s138, 8
          %s140 = scalar_lea.vmem %s0, %s139
          %s141 = smul.u32 2, %s18
          %s142 = ssub.s32 3, %s141
          %p143 = scmp.lt.s32.totalorder %s142, 2
          %s144 = scalar_select %p143, %s142, 2
          %s145 = smul.u32 128, %s144
        $region24: #{tpu_custom_call.1} parent=19 // pred_fallthru
          _
      $region20: #{tpu_custom_call.1} parent=5 // pred_fallthru
        _
      %p146 = scmp.le.s32.totalorder 1, %s11
      %p147 = scmp.lt.s32.totalorder %s11, 3
      %p148 = pnand %p146, %p147
      %p149 = pneg %p148
      // Predicated region
      $region25: #{tpu_custom_call.1} parent=5 // pred_check
        _
      $region26: #{tpu_custom_call.1} parent=5 // pred_check_branch
        %151 = sbr.rel (%p148) target = $region28
      $region27: #{tpu_custom_call.1} parent=5 // pred_region
        %s152 = ssub.s32 %s11, 1
        %s153 = smul.u32 2, %s20
        %s154 = ssub.s32 3, %s153
        %p155 = scmp.lt.s32.totalorder %s154, 2
        %s156 = scalar_select %p155, %s154, 2
        %s157 = smul.u32 128, %s156
        %p158 = scmp.lt.s32.totalorder %s153, 2
        %s159 = scalar_select %p158, %s153, 2
        %s160 = smul.addr %s159, 8
        %s161 = scalar_lea.vmem %s0, %s160
        %p162 = pneg %p49
        %p163 = pneg %p46
        %p164 = scmp.lt.s32.totalorder %s21, 0
        %s165 = scalar_select %p164, %s21, 0
        %s166 = smul.addr %s165, 2
        %s167 = scalar_lea.vmem %s1, %s166
        %p168 = pneg %p75
        %p169 = pneg %p72
        %p170 = pneg %p103
        %p171 = pneg %p100
        %s172 = sand.u32 %s90, 1
        %s173 = scalar_lea.sflag [#allocation3], %s172
        %s174 = sand.u32 %s90, 1
        %s175 = smul.addr %s174, 16
        %s176 = scalar_lea.vmem [#allocation2], %s175
        %s177 = smul.u32 2, %s20
        %s178 = ssub.s32 3, %s177
        %p179 = scmp.lt.s32.totalorder %s178, 2
        %s180 = scalar_select %p179, %s178, 2
        %s181 = smul.u32 128, %s180
        %p182 = scmp.lt.s32.totalorder %s177, 2
        %s183 = scalar_select %p182, %s177, 2
        %s184 = smul.addr %s183, 8
        %s185 = scalar_lea.vmem %s0, %s184
        %s186 = smul.u32 2, %s20
        %s187 = ssub.s32 3, %s186
        %p188 = scmp.lt.s32.totalorder %s187, 2
        %s189 = scalar_select %p188, %s187, 2
        %s190 = smul.u32 128, %s189
        %p191 = scmp.lt.s32.totalorder %s21, 0
        %s192 = scalar_select %p191, %s21, 0
        %s193 = smul.addr %s192, 2
        %s194 = scalar_lea.vmem %s1, %s193
        %s195 = smul.u32 2, %s20
        %s196 = ssub.s32 3, %s195
        %p197 = scmp.lt.s32.totalorder %s196, 2
        %s198 = scalar_select %p197, %s196, 2
        %s199 = smul.u32 128, %s198
        %v200 = vld [vmem:[%s185] sm:$0xff]
        %v201 = vld [vmem:[%s185 + $0x8] sm:$0xff]
        %v202 = vld [vmem:[%s194] sm:$0x3]
        %204 = vset.pattern.permute.xlu0 0
        %205 = vperm.xlu0 %204, %v200
        %v206 = vpop.permute.xlu0 %205
        %209 = vset.pattern.permute.xlu0 0
        %210 = vperm.xlu0 %209, %v201
        %v211 = vpop.permute.xlu0 %210
        %v213 = vlaneseq
        %v214 = vshrl.u32 %v213, 7
        %v215 = vsub.s32 0, %v214
        %v216 = vrot.slane %v202, %v215
        %v217 = vsub.f32 %v206, %v216
        %v218 = vsub.f32 %v211, %v216
        %v219 = vmul.f32 %v217, %v217
        %v220 = vmul.f32 %v218, %v218
        %221 = vset.pattern.permute.xlu0 1
        %222 = vperm.xlu0 %221, %v200
        %v223 = vpop.permute.xlu0 %222
        %225 = vset.pattern.permute.xlu0 1
        %226 = vperm.xlu0 %225, %v201
        %v227 = vpop.permute.xlu0 %226
        %v229 = vlaneseq
        %v230 = vshrl.u32 %v229, 7
        %v231 = vsub.s32 1, %v230
        %v232 = vrot.slane %v202, %v231
        %v233 = vsub.f32 %v223, %v232
        %v234 = vsub.f32 %v227, %v232
        %v235 = vmul.f32 %v233, %v233
        %v236 = vmul.f32 %v234, %v234
        %v237 = vadd.f32 %v219, %v235
        %v238 = vadd.f32 %v220, %v236
        %v239 = vrsqrt.pop %v237
        %v240 = vmul.f32 %v237, %v239
        %vm241 = vcmp.eq.f32.partialorder %v237, inf
        %v242 = vsel %vm241, %v237, %v240
        %vm243 = vcmp.eq.f32.partialorder %v237, 0.0
        %v244 = vand.u32 %v237, 2147483648
        %v245 = vsel %vm243, %v244, %v242
        %v246 = vrsqrt.pop %v238
        %v247 = vmul.f32 %v238, %v246
        %vm248 = vcmp.eq.f32.partialorder %v238, inf
        %v249 = vsel %vm248, %v238, %v247
        %vm250 = vcmp.eq.f32.partialorder %v238, 0.0
        %v251 = vand.u32 %v238, 2147483648
        %v252 = vsel %vm250, %v251, %v249
        %v253 = vmax.f32 %v245, 1e-15
        %v254 = vmax.f32 %v252, 1e-15
        %v255 = vmul.f32 %v253, -1.0
        %v256 = vmul.f32 %v254, -1.0
        %v257 = vmul.f32 %v255, 1.442695
        %v258 = vpow.pop %v257
        %v259 = vmul.f32 %v256, 1.442695
        %v260 = vpow.pop %v259
        %vm261 = vcmask 195584
        %262 = vst.msk [vmem:[%s176] sm:$0xff] %vm261, %v258
        %263 = vst.msk [vmem:[%s176 + $0x8] sm:$0xff] %vm261, %v260
        %s264 = sand.u32 %s90, 1
        %s265 = scalar_lea.sflag [#allocation3], %s264
        %s266 = sand.u32 %s90, 1
        %s267 = smul.addr %s266, 16
        %s268 = scalar_lea.vmem [#allocation2], %s267
        // Predicated region
        $region29: #{tpu_custom_call.1} parent=27 // pred_check
          %p269 = pneg %p100
        $region30: #{tpu_custom_call.1} parent=27 // pred_check_branch
          %271 = sbr.rel (%p269) target = $region32
        $region31: #{tpu_custom_call.1} parent=27 // pred_region
          %s272 = smul.u32 2, %s20
          %s273 = ssub.s32 3, %s272
          %p274 = scmp.lt.s32.totalorder %s273, 2
          %s275 = scalar_select %p274, %s273, 2
          %s276 = smul.u32 128, %s275
          %s278 = ssub.s32 256, %s276
          %279 = vsyncadd %s265, %s278
          %p280 = scmp.ne.s32.totalorder 0, %s276
          %s281 = sadd.s32 %s21, %s272
          %s282 = smul.addr %s281, 128
          %s283 = scalar_lea.hbm %s2, %s282
          %s284 = smul.u32 8, %s275
          %s285 = sshll.u32 %s268, 4
          %s286 = int_to_ptr.vmem [resolvable:$true] %s285
          %s287 = sshll.u32 %s284, 4
          %291 = dma.vmem_to_hbm [thread:$0]  (%p280), %s286, %s287, %s283, %s265, 128, 128, 8
        $region32: #{tpu_custom_call.1} parent=27 // pred_fallthru
          _
      $region28: #{tpu_custom_call.1} parent=5 // pred_fallthru
        _
      %p292 = scmp.le.s32.totalorder 2, %s11
      // Predicated region
      $region33: #{tpu_custom_call.1} parent=5 // pred_check
        %p293 = pneg %p292
      $region34: #{tpu_custom_call.1} parent=5 // pred_check_branch
        %295 = sbr.rel (%p293) target = $region36
      $region35: #{tpu_custom_call.1} parent=5 // pred_region
        %s296 = ssub.s32 %s11, 2
        // Predicated region
        $region37: #{tpu_custom_call.1} parent=35 // pred_check
          %p297 = pneg %p106
        $region38: #{tpu_custom_call.1} parent=35 // pred_check_branch
          %299 = sbr.rel (%p297) target = $region40
        $region39: #{tpu_custom_call.1} parent=35 // pred_region
          %s300 = sand.u32 %s91, 1
          %s301 = scalar_lea.sflag [#allocation3], %s300
          %s302 = sand.u32 %s91, 1
          %s303 = smul.addr %s302, 16
          %s304 = scalar_lea.vmem [#allocation2], %s303
          %305 = dma.done %s301, 256
        $region40: #{tpu_custom_call.1} parent=35 // pred_fallthru
          _
      $region36: #{tpu_custom_call.1} parent=5 // pred_fallthru
        _
    $region6: #{tpu_custom_call.1} parent=1 // loop_footer
      %s15 = sadd.s32 1, %s11
    $region7: #{tpu_custom_call.1} parent=1 // loop_footer_branch
      %10 = sbr.rel target = $region3
    $region8: #{tpu_custom_call.1} parent=1 // loop_exit
      _
    %306 = vsyncpa [#allocation3], 1
    %s307 = scalar_lea.sflag [#allocation3], 1
    %308 = vsyncpa %s307, 1

</llo_original>
